<compile_context>
chip_gen: v6e
topology: v6e:2x2x1
jax: 0.10.0
libtpu: 0.0.40
codegen_flags: <defaults>
</compile_context>

<pallas_src>
import functools

import jax
import jax.numpy as jnp
from jax import lax
from jax.experimental import pallas as pl
from jax.experimental.pallas import tpu as pltpu


def _round_up(x, m):
    return (x + m - 1) // m * m


# ---------------------------------------------------------------------------
# Kernel 1: HBM-bound scan.  grid = (row_blocks, s_tiles), both "parallel".
# Each step loads one [ROWS, S_TILE] video tile and writes a lane-folded
# partial sum [ROWS, 128] into its own output block.
# ---------------------------------------------------------------------------
def _pool_scan_kernel(v_ref, out_ref, *, total_s, s_tile):
    def lane_fold(tile):
        # Lane-preserving partial sum: s_tile/128 plain VALU adds; the result
        # is a single 128-lane slab -> unmasked lane-dense store.
        acc = tile[:, 0:128]
        for j in range(1, s_tile // 128):
            acc = acc + tile[:, j * 128:(j + 1) * 128]
        return acc

    rem = total_s % s_tile
    if rem == 0:
        # No ragged tile anywhere: steady state is pure DMA + adds.
        out_ref[...] = lane_fold(v_ref[...].astype(jnp.float32))
    else:
        st = pl.program_id(1)
        last = pl.num_programs(1) - 1

        @pl.when(st < last)
        def _full():
            out_ref[...] = lane_fold(v_ref[...].astype(jnp.float32))

        @pl.when(st == last)
        def _ragged():
            # Zero the out-of-range lanes of the partial last block before
            # summing (the padded region of a partial block is garbage).
            tile = v_ref[...].astype(jnp.float32)
            col = lax.broadcasted_iota(jnp.int32, tile.shape, 1)
            tile = jnp.where(col < rem, tile, 0.0)
            out_ref[...] = lane_fold(tile)


# ---------------------------------------------------------------------------
# Kernel 2: one-shot epilogue (mean, backbone projection stand-in, ReLU,
# nn.Linear classifier).  All operands are tiny and fully VMEM-resident.
# ---------------------------------------------------------------------------
def _head_kernel(part_ref, sel_ref, wp_ref, bp_ref, wc_ref, bc_ref, out_ref,
                 *, inv_s, n_valid_rows):
    # part_ref: [R_out, n_s_tiles*128] f32 partial sums
    pooled = jnp.sum(part_ref[...], axis=-1, keepdims=True) * inv_s   # [R_out, 1]
    if part_ref.shape[0] > n_valid_rows:
        # Rows beyond B*C came from a partial row block (garbage): zero them
        # before any multiply so Inf/NaN cannot leak through 0*Inf.
        rid = lax.broadcasted_iota(jnp.int32, pooled.shape, 0)
        pooled = jnp.where(rid < n_valid_rows, pooled, 0.0)
    # feats[b, f] = sum_c pooled[b*C + c] * wp[c, f]  (expressed as sel @ .)
    contrib = pooled * wp_ref[...]                                    # [R_out, F]
    feats = jnp.dot(sel_ref[...], contrib,
                    preferred_element_type=jnp.float32) + bp_ref[...]
    feats = jnp.maximum(feats, 0.0)                                   # [B, F]
    logits = jnp.dot(feats, wc_ref[...],
                     preferred_element_type=jnp.float32) + bc_ref[...]
    out_ref[...] = logits.astype(out_ref.dtype)                       # [B, NC_PAD]


def engagement_net_forward(video, wp, bp, wc_t, bc, *,
                           target_block_bytes=2 * 1024 * 1024,
                           max_s_tile=32768,
                           max_rows=256):
    """video: [B, C, T, H, W]; returns logits [B, num_classes] (float32)."""
    B, C, T, H, W = video.shape
    S = T * H * W
    R = B * C
    feat_dim = wp.shape[1]
    num_classes = wc_t.shape[1]
    itemsize = jnp.dtype(video.dtype).itemsize

    # ---- S tiling: large lane-dense tiles; guarantee >= 2 S tiles when
    # possible so the parallel grid always has >= 2 iterations (v7x megacore).
    s_pad = _round_up(S, 128)
    s_tile = min(max_s_tile, s_pad)
    if s_tile == s_pad and s_pad >= 256:
        s_tile = _round_up(s_pad // 2, 128)
    num_s_tiles = pl.cdiv(S, s_tile)

    # ---- row blocking: aim for ~target_block_bytes per video block.
    row_align = 8 if itemsize >= 4 else 16        # bf16/f16 -> 16-row packing
    rows_target = max(row_align, target_block_bytes // (s_tile * itemsize))
    rows = min(_round_up(rows_target, row_align), _round_up(max_rows, row_align))
    if R <= rows:
        rows = R                                   # full first dim: always legal
        num_row_blocks = 1
    else:
        num_row_blocks = pl.cdiv(R, rows)
    r_out = num_row_blocks * rows

    # ---- VMEM budget derived from the actual blocks (double-buffered),
    # comfortably below v7x's 64 MiB.
    vmem_bytes = (2 * rows * s_tile * itemsize      # video block, double-buffered
                  + 2 * rows * 128 * 4              # partial-sum block
                  + (2 << 20))                      # margin
    vmem_limit = int(min(max(vmem_bytes, 8 << 20), 48 << 20))

    # ---- stage 1: HBM scan -> lane-folded partial sums (no video copy/pad).
    v2d = video.reshape(R, S)
    partials = pl.pallas_call(
        functools.partial(_pool_scan_kernel, total_s=S, s_tile=s_tile),
        out_shape=jax.ShapeDtypeStruct((r_out, num_s_tiles * 128), jnp.float32),
        grid=(num_row_blocks, num_s_tiles),
        in_specs=[pl.BlockSpec((rows, s_tile), lambda rb, st: (rb, st))],
        out_specs=pl.BlockSpec((rows, 128), lambda rb, st: (rb, st)),
        compiler_params=pltpu.CompilerParams(
            dimension_semantics=("parallel", "parallel"),
            vmem_limit_bytes=vmem_limit,
        ),
    )(v2d)

    # ---- stage 2: tiny epilogue (constant operands built on host, all tiny).
    nc_pad = _round_up(max(num_classes, 128), 128)    # lane-dense output
    r_ids = jnp.arange(r_out)
    sel = (((r_ids[None, :] // C) == jnp.arange(B)[:, None]) &
           (r_ids[None, :] < R)).astype(jnp.float32)                 # [B, r_out]
    reps = -(-r_out // C)
    wp_rep = jnp.tile(wp.astype(jnp.float32), (reps, 1))[:r_out]     # [r_out, F]
    bp2 = bp.reshape(1, feat_dim).astype(jnp.float32)
    wc_pad = jnp.pad(wc_t.astype(jnp.float32),
                     ((0, 0), (0, nc_pad - num_classes)))            # [F, nc_pad]
    bc_pad = jnp.pad(bc.reshape(1, num_classes).astype(jnp.float32),
                     ((0, 0), (0, nc_pad - num_classes)))            # [1, nc_pad]

    logits_pad = pl.pallas_call(
        functools.partial(_head_kernel, inv_s=float(1.0 / S), n_valid_rows=R),
        out_shape=jax.ShapeDtypeStruct((B, nc_pad), jnp.float32),
    )(partials, sel, wp_rep, bp2, wc_pad, bc_pad)

    return logits_pad[:, :num_classes]


def _reference(video, wp, bp, wc_t, bc):
    B, C = video.shape[0], video.shape[1]
    pooled = video.reshape(B, C, -1).astype(jnp.float32).mean(axis=-1)
    feats = jnp.maximum(pooled @ wp + bp, 0.0)
    return feats @ wc_t + bc


if __name__ == "__main__":
    # Small shapes consistent with forward(): video [B, C, T, H, W].
    B, C, T, H, W = 2, 4, 8, 16, 16          # S = T*H*W = 2048 -> 2 S-tiles
    feat_dim, num_classes = 32, 4

    key = jax.random.PRNGKey(0)
    k_v, k_wp, k_bp, k_wc, k_bc = jax.random.split(key, 5)

    video = jax.random.normal(k_v, (B, C, T, H, W), dtype=jnp.float32)

    # Synthetic backbone projection params (deterministic stand-in).
    wp = jax.random.normal(k_wp, (C, feat_dim), dtype=jnp.float32) * 0.1
    bp = jax.random.normal(k_bp, (feat_dim,), dtype=jnp.float32) * 0.01

    # Classifier nn.Linear(feat_dim, num_classes): weight [NC, F]; pass W^T.
    wc = jax.random.normal(k_wc, (num_classes, feat_dim), dtype=jnp.float32) * 0.1
    bc = jax.random.normal(k_bc, (num_classes,), dtype=jnp.float32) * 0.01
    wc_t = wc.T

    logits = engagement_net_forward(video, wp, bp, wc_t, bc)
    jax.block_until_ready(logits)
    ref = _reference(video, wp, bp, wc_t, bc)
    assert logits.shape == (B, num_classes)
    assert jnp.allclose(logits, ref, atol=1e-4, rtol=1e-4)

    # Ragged-S path (S not a multiple of the tile): exercises the in-kernel
    # lane mask that replaced the host-side jnp.pad.
    video_rag = video[:, :, :, :, :15]               # S = 8*16*15 = 1920
    logits_rag = engagement_net_forward(video_rag, wp, bp, wc_t, bc)
    jax.block_until_ready(logits_rag)
    ref_rag = _reference(video_rag, wp, bp, wc_t, bc)
    assert jnp.allclose(logits_rag, ref_rag, atol=1e-4, rtol=1e-4)

    # bf16 video path (halves HBM traffic on v5e; kernel upcasts per tile).
    video_bf16 = video.astype(jnp.bfloat16)
    logits_bf16 = engagement_net_forward(video_bf16, wp, bp, wc_t, bc)
    jax.block_until_ready(logits_bf16)
    ref_bf16 = _reference(video_bf16, wp, bp, wc_t, bc)
    assert jnp.allclose(logits_bf16, ref_bf16, atol=1e-2, rtol=1e-2)

    print("KERNEL_OK")
</pallas_src>

<mosaic_0001>
module attributes {stable_mosaic.version = 11 : i64} {
  func.func @_pool_scan_kernel(%arg0: i32, %arg1: i32, %arg2: memref<8x1024xf32, #tpu.memory_space<vmem>>, %arg3: memref<8x128xf32, #tpu.memory_space<vmem>>) attributes {dimension_semantics = [#tpu.dimension_semantics<parallel>, #tpu.dimension_semantics<parallel>], iteration_bounds = array<i64: 1, 2>, scalar_prefetch = 0 : i64, scratch_operands = 0 : i64, tpu.core_type = #tpu.core_type<tc>, window_params = [{transform_indices = @transform_0, window_bounds = array<i64: 8, 1024>}, {transform_indices = @transform_1, window_bounds = array<i64: 8, 128>}]} {
    %c0 = arith.constant 0 : index
    %c0_0 = arith.constant 0 : index
    %0 = vector.load %arg2[%c0, %c0_0] : memref<8x1024xf32, #tpu.memory_space<vmem>>, vector<8x1024xf32>
    %1 = vector.extract_strided_slice %0 {offsets = [0, 0], sizes = [8, 128], strides = [1, 1]} : vector<8x1024xf32> to vector<8x128xf32>
    %2 = vector.extract_strided_slice %0 {offsets = [0, 128], sizes = [8, 128], strides = [1, 1]} : vector<8x1024xf32> to vector<8x128xf32>
    %3 = arith.addf %1, %2 : vector<8x128xf32>
    %4 = vector.extract_strided_slice %0 {offsets = [0, 256], sizes = [8, 128], strides = [1, 1]} : vector<8x1024xf32> to vector<8x128xf32>
    %5 = arith.addf %3, %4 : vector<8x128xf32>
    %6 = vector.extract_strided_slice %0 {offsets = [0, 384], sizes = [8, 128], strides = [1, 1]} : vector<8x1024xf32> to vector<8x128xf32>
    %7 = arith.addf %5, %6 : vector<8x128xf32>
    %8 = vector.extract_strided_slice %0 {offsets = [0, 512], sizes = [8, 128], strides = [1, 1]} : vector<8x1024xf32> to vector<8x128xf32>
    %9 = arith.addf %7, %8 : vector<8x128xf32>
    %10 = vector.extract_strided_slice %0 {offsets = [0, 640], sizes = [8, 128], strides = [1, 1]} : vector<8x1024xf32> to vector<8x128xf32>
    %11 = arith.addf %9, %10 : vector<8x128xf32>
    %12 = vector.extract_strided_slice %0 {offsets = [0, 768], sizes = [8, 128], strides = [1, 1]} : vector<8x1024xf32> to vector<8x128xf32>
    %13 = arith.addf %11, %12 : vector<8x128xf32>
    %14 = vector.extract_strided_slice %0 {offsets = [0, 896], sizes = [8, 128], strides = [1, 1]} : vector<8x1024xf32> to vector<8x128xf32>
    %15 = arith.addf %13, %14 : vector<8x128xf32>
    %c0_1 = arith.constant 0 : index
    %c0_2 = arith.constant 0 : index
    %16 = vector.load %arg3[%c0_1, %c0_2] : memref<8x128xf32, #tpu.memory_space<vmem>>, vector<8x128xf32>
    tpu.vector_store %arg3[%c0_1, %c0_2], %15 {strides = array<i32>} : memref<8x128xf32, #tpu.memory_space<vmem>>, vector<8x128xf32>,
    return
  }
  func.func @transform_0(%arg0: i32, %arg1: i32) -> (i32, i32) {
    %c0_i32 = arith.constant 0 : i32
    return %arg0, %arg1 : i32, i32
  }
  func.func @transform_1(%arg0: i32, %arg1: i32) -> (i32, i32) {
    %c0_i32 = arith.constant 0 : i32
    return %arg0, %arg1 : i32, i32
  }
}

</mosaic_0001>

<llo_original>
// kernel: tpu_custom_call.1
$region0: #{tpu_custom_call.1}
  #allocation0 [shape = 'u32[]', space=smem, size = 0x4, offset = 0x4, fixed_abs, tag = 'smem constant byte address 0x4 - core index']
  #allocation1 [shape = 'u32[144,128]{1,0:T(1,128)}', space=vmem, size = 0x12000, scoped, tag = 'internal scratch']
  %s0 = inlined_call_operand.hbm [shape: f32[8,2048], index: 0, kind: input, shape index: {}]
  %s1 = inlined_call_operand.hbm [shape: f32[8,256], index: 1, kind: output, shape index: {}]
  %s2 = sld [smem:[#allocation0]]
  $region41: #{tpu_custom_call.1} parent=0
    _
  %s4 = ssub.s32 1, %s2
  %s5 = scalar_select 0, %s4, %s2
  $region1: #{tpu_custom_call.1} parent=0
    #allocation2 [shape = 'u8[65536]{0}', space=vmem, size = 0x10000, scoped, tag = 'input window, operand 0']
    #allocation3 [shape = 's32[2]{0}', space=sflag, size = 0x8, scoped, tag = 'scoped memory for tpu_custom_call.1']
    #allocation4 [shape = 's32[2]{0}', space=sflag, size = 0x8, scoped, tag = 'scoped memory for tpu_custom_call.1']
    #allocation5 [shape = 'u8[8192]{0}', space=vmem, size = 0x2000, scoped, tag = 'output window, operand 0']
    %6 = vsyncpa [#allocation3], 0
    %s7 = scalar_lea.sflag [#allocation3], 1
    %8 = vsyncpa %s7, 0
    %9 = vsyncpa [#allocation4], 0
    %s10 = scalar_lea.sflag [#allocation4], 1
    %11 = vsyncpa %s10, 0
    loop: start=0, step=1, limit=4
    $region2: #{tpu_custom_call.1} parent=1 // loop_pre_header
      _
    $region3: #{tpu_custom_call.1} parent=1 // loop_header
      %s13 = sphi 0, %s17
      %p14 = scmp.ge.s32.totalorder %s13, 4
      %s20 = sphi 0, %s32
      %s21 = sphi 0, %s28
      %s22 = sphi 0, %s20
      %s23 = sphi 0, %s21
      %s24 = sphi 0, %s22
      %s25 = sphi 0, %s23
      %s37 = sphi 0, %s39
      %s40 = sphi 0, %s37
      %s41 = sphi 0, %s40
      %s57 = sphi 0, %s41
      %s65 = sphi 0, %s67
      %s68 = sphi 0, %s65
      %s69 = sphi 0, %s68
      %s85 = sphi 0, %s69
    $region4: #{tpu_custom_call.1} parent=1 // loop_header_branch
      %16 = sbr.rel (%p14) target = $region8
    $region5: #{tpu_custom_call.1} parent=1 // loop_body
      %s18 = ssub.s32 %s13, 1
      %s19 = ssub.s32 %s13, 2
      %s26 = sadd.s32 1, %s21
      %p27 = scmp.ge.s32.totalorder %s26, 2
      %s28 = scalar_select %p27, 0, %s26
      %s29 = sadd.s32 1, %s20
      %s30 = scalar_select %p27, %s29, %s20
      %p31 = scmp.ge.s32.totalorder %s30, 1
      %s32 = scalar_select %p31, 0, %s30
      %s33 = ssub.s32 %s20, %s32
      %s34 = ssub.s32 %s21, %s28
      %s35 = sor.u32 %s33, %s34
      %p36 = scmp.eq.s32.totalorder %s35, 0
      %s38 = sadd.s32 %s37, 1
      %s39 = scalar_select %p36, %s37, %s38
      %p42 = pneg %p36
      %p43 = scmp.eq.s32.totalorder %s13, 1
      %p44 = por %p42, %p43
      %p45 = scmp.ne.s32.totalorder %s37, %s40
      %p46 = scmp.eq.s32.totalorder %s13, 0
      %p47 = por %p45, %p46
      %p48 = scmp.ne.s32.totalorder %s37, %s40
      %p49 = scmp.eq.s32.totalorder %s18, 1
      %p50 = por %p48, %p49
      %p51 = scmp.ne.s32.totalorder %s40, %s41
      %p52 = scmp.eq.s32.totalorder %s18, 0
      %p53 = por %p51, %p52
      %p54 = scmp.ne.s32.totalorder %s40, %s41
      %p55 = scmp.eq.s32.totalorder %s19, 1
      %p56 = por %p54, %p55
      %p58 = scmp.ne.s32.totalorder %s41, %s57
      %p59 = scmp.eq.s32.totalorder %s19, 0
      %p60 = por %p58, %p59
      %s61 = ssub.s32 %s20, %s32
      %s62 = ssub.s32 %s21, %s28
      %s63 = sor.u32 %s61, %s62
      %p64 = scmp.eq.s32.totalorder %s63, 0
      %s66 = sadd.s32 %s65, 1
      %s67 = scalar_select %p64, %s65, %s66
      %p70 = pneg %p64
      %p71 = scmp.eq.s32.totalorder %s13, 1
      %p72 = por %p70, %p71
      %p73 = scmp.ne.s32.totalorder %s65, %s68
      %p74 = scmp.eq.s32.totalorder %s13, 0
      %p75 = por %p73, %p74
      %p76 = scmp.ne.s32.totalorder %s65, %s68
      %p77 = scmp.eq.s32.totalorder %s18, 1
      %p78 = por %p76, %p77
      %p79 = scmp.ne.s32.totalorder %s68, %s69
      %p80 = scmp.eq.s32.totalorder %s18, 0
      %p81 = por %p79, %p80
      %p82 = scmp.ne.s32.totalorder %s68, %s69
      %p83 = scmp.eq.s32.totalorder %s19, 1
      %p84 = por %p82, %p83
      %p86 = scmp.ne.s32.totalorder %s69, %s85
      %p87 = scmp.eq.s32.totalorder %s19, 0
      %p88 = por %p86, %p87
      %p89 = scmp.le.s32.totalorder 1, %s13
      %p90 = scmp.lt.s32.totalorder %s13, 3
      %p91 = pnand %p89, %p90
      %p92 = pneg %p91
      // Predicated region
      $region9: #{tpu_custom_call.1} parent=5 // pred_check
        _
      $region10: #{tpu_custom_call.1} parent=5 // pred_check_branch
        %94 = sbr.rel (%p91) target = $region12
      $region11: #{tpu_custom_call.1} parent=5 // pred_region
        %s95 = ssub.s32 %s13, 1
      $region12: #{tpu_custom_call.1} parent=5 // pred_fallthru
        _
      %p96 = scmp.lt.s32.totalorder %s13, 2
      // Predicated region
      $region13: #{tpu_custom_call.1} parent=5 // pred_check
        %p97 = pneg %p96
      $region14: #{tpu_custom_call.1} parent=5 // pred_check_branch
        %99 = sbr.rel (%p97) target = $region16
      $region15: #{tpu_custom_call.1} parent=5 // pred_region
        // Predicated region
        $region17: #{tpu_custom_call.1} parent=15 // pred_check
          %p100 = pneg %p47
        $region18: #{tpu_custom_call.1} parent=15 // pred_check_branch
          %102 = sbr.rel (%p100) target = $region20
        $region19: #{tpu_custom_call.1} parent=15 // pred_region
          %s103 = sand.u32 %s37, 1
          %s104 = scalar_lea.sflag [#allocation3], %s103
          %s105 = sand.u32 %s37, 1
          %s106 = smul.addr %s105, 64
          %s107 = scalar_lea.vmem [#allocation2], %s106
          %s108 = smul.u32 8, %s21
          %s110 = ssub.s32 1024, 1024
          %111 = vsyncadd %s104, %s110
          %s112 = smul.addr %s20, 16
          %s113 = sadd.s32 %s108, %s112
          %s114 = smul.addr %s113, 128
          %s115 = scalar_lea.hbm %s0, %s114
          %s117 = sshll.u32 %s107, 4
          %s118 = int_to_ptr.vmem [resolvable:$true] %s117
          %120 = dma.hbm_to_vmem [thread:$0]  %s115, 1024, %s118, %s104
        $region20: #{tpu_custom_call.1} parent=15 // pred_fallthru
          _
      $region16: #{tpu_custom_call.1} parent=5 // pred_fallthru
        _
      %p121 = scmp.le.s32.totalorder 1, %s13
      %p122 = scmp.lt.s32.totalorder %s13, 3
      %p123 = pnand %p121, %p122
      %p124 = pneg %p123
      // Predicated region
      $region21: #{tpu_custom_call.1} parent=5 // pred_check
        _
      $region22: #{tpu_custom_call.1} parent=5 // pred_check_branch
        %126 = sbr.rel (%p123) target = $region24
      $region23: #{tpu_custom_call.1} parent=5 // pred_region
        %s127 = ssub.s32 %s13, 1
        %s128 = sand.u32 %s40, 1
        %s129 = scalar_lea.sflag [#allocation3], %s128
        %s130 = sand.u32 %s40, 1
        %s131 = smul.addr %s130, 64
        %s132 = scalar_lea.vmem [#allocation2], %s131
        // Predicated region
        $region25: #{tpu_custom_call.1} parent=23 // pred_check
          %p133 = pneg %p53
        $region26: #{tpu_custom_call.1} parent=23 // pred_check_branch
          %135 = sbr.rel (%p133) target = $region28
        $region27: #{tpu_custom_call.1} parent=23 // pred_region
          %136 = dma.done %s129, 1024
        $region28: #{tpu_custom_call.1} parent=23 // pred_fallthru
          _
        %s137 = sand.u32 %s40, 1
        %s138 = scalar_lea.sflag [#allocation3], %s137
        %s139 = sand.u32 %s40, 1
        %s140 = smul.addr %s139, 64
        %s141 = scalar_lea.vmem [#allocation2], %s140
        %p142 = pneg %p53
        %p143 = pneg %p50
        %p144 = pneg %p81
        %p145 = pneg %p78
        %s146 = sand.u32 %s68, 1
        %s147 = scalar_lea.sflag [#allocation4], %s146
        %s148 = sand.u32 %s68, 1
        %s149 = smul.addr %s148, 8
        %s150 = scalar_lea.vmem [#allocation5], %s149
        %s151 = smul.u32 8, %s23
        %v152 = vld [vmem:[%s132] sm:$0xff]
        %v153 = vld [vmem:[%s132 + $0x8] sm:$0xff]
        %v154 = vld [vmem:[%s132 + $0x10] sm:$0xff]
        %v155 = vld [vmem:[%s132 + $0x18] sm:$0xff]
        %v156 = vld [vmem:[%s132 + $0x20] sm:$0xff]
        %v157 = vld [vmem:[%s132 + $0x28] sm:$0xff]
        %v158 = vld [vmem:[%s132 + $0x30] sm:$0xff]
        %v159 = vld [vmem:[%s132 + $0x38] sm:$0xff]
        %v160 = vadd.f32 %v152, %v153
        %v161 = vadd.f32 %v160, %v154
        %v162 = vadd.f32 %v161, %v155
        %v163 = vadd.f32 %v162, %v156
        %v164 = vadd.f32 %v163, %v157
        %v165 = vadd.f32 %v164, %v158
        %v166 = vadd.f32 %v165, %v159
        %167 = vst [vmem:[%s150] sm:$0xff] %v166
        %s168 = sand.u32 %s68, 1
        %s169 = scalar_lea.sflag [#allocation4], %s168
        %s170 = sand.u32 %s68, 1
        %s171 = smul.addr %s170, 8
        %s172 = scalar_lea.vmem [#allocation5], %s171
        // Predicated region
        $region29: #{tpu_custom_call.1} parent=23 // pred_check
          %p173 = pneg %p78
        $region30: #{tpu_custom_call.1} parent=23 // pred_check_branch
          %175 = sbr.rel (%p173) target = $region32
        $region31: #{tpu_custom_call.1} parent=23 // pred_region
          %s177 = ssub.s32 128, 128
          %178 = vsyncadd %s169, %s177
          %s179 = smul.addr %s22, 2
          %s180 = sadd.s32 %s23, %s179
          %s181 = smul.addr %s180, 128
          %s182 = scalar_lea.hbm %s1, %s181
          %s184 = sshll.u32 %s172, 4
          %s185 = int_to_ptr.vmem [resolvable:$true] %s184
          %187 = dma.vmem_to_hbm [thread:$0]  %s185, 128, %s182, %s169
        $region32: #{tpu_custom_call.1} parent=23 // pred_fallthru
          _
      $region24: #{tpu_custom_call.1} parent=5 // pred_fallthru
        _
      %p188 = scmp.le.s32.totalorder 2, %s13
      // Predicated region
      $region33: #{tpu_custom_call.1} parent=5 // pred_check
        %p189 = pneg %p188
      $region34: #{tpu_custom_call.1} parent=5 // pred_check_branch
        %191 = sbr.rel (%p189) target = $region36
      $region35: #{tpu_custom_call.1} parent=5 // pred_region
        %s192 = ssub.s32 %s13, 2
        // Predicated region
        $region37: #{tpu_custom_call.1} parent=35 // pred_check
          %p193 = pneg %p84
        $region38: #{tpu_custom_call.1} parent=35 // pred_check_branch
          %195 = sbr.rel (%p193) target = $region40
        $region39: #{tpu_custom_call.1} parent=35 // pred_region
          %s196 = sand.u32 %s69, 1
          %s197 = scalar_lea.sflag [#allocation4], %s196
          %s198 = sand.u32 %s69, 1
          %s199 = smul.addr %s198, 8
          %s200 = scalar_lea.vmem [#allocation5], %s199
          %201 = dma.done %s197, 128
        $region40: #{tpu_custom_call.1} parent=35 // pred_fallthru
          _
      $region36: #{tpu_custom_call.1} parent=5 // pred_fallthru
        _
    $region6: #{tpu_custom_call.1} parent=1 // loop_footer
      %s17 = sadd.s32 1, %s13
    $region7: #{tpu_custom_call.1} parent=1 // loop_footer_branch
      %12 = sbr.rel target = $region3
    $region8: #{tpu_custom_call.1} parent=1 // loop_exit
      _
    %202 = vsyncpa [#allocation3], 1
    %s203 = scalar_lea.sflag [#allocation3], 1
    %204 = vsyncpa %s203, 1
    %205 = vsyncpa [#allocation4], 1
    %s206 = scalar_lea.sflag [#allocation4], 1
    %207 = vsyncpa %s206, 1

</llo_original>
